<compile_context>
chip_gen: v7x
topology: tpu7x:2x2x1
jax: 0.10.0
libtpu: 0.0.40
codegen_flags: <defaults>
</compile_context>

<pallas_src>
import functools

import jax
import jax.numpy as jnp
from jax.experimental import pallas as pl
from jax.experimental.pallas import tpu as pltpu

_SUBLANE_F32 = 8
_MIN_SPLIT_BYTES = 2 * 1024 * 1024      # force >=2 even grid steps above this


def _lsq_kernel(s_ref, x_ref, o_ref, *, thd_neg, thd_pos):
    # s_ref: (1,) f32 in SMEM.  grad_scale only alters the backward pass, so
    # the forward uses s as-is.
    s = s_ref[0]
    x = x_ref[...].astype(jnp.float32)      # native dtype in HBM, f32 in vregs
    y = x / s                               # exact divide; hidden under DMA
    y = jnp.clip(y, jnp.float32(thd_neg), jnp.float32(thd_pos))
    y = jnp.round(y)                        # round-half-to-even == torch.round
    o_ref[...] = (y * s).astype(o_ref.dtype)


def _thresholds(bit, all_positive, symmetric):
    if all_positive:
        assert not symmetric, "Positive quantization cannot be symmetric"
        return 0, 2 ** bit - 1
    if symmetric:
        return -(2 ** (bit - 1)) + 1, 2 ** (bit - 1) - 1
    return -(2 ** (bit - 1)), 2 ** (bit - 1) - 1


@functools.lru_cache(maxsize=1)
def _block_config():
    """(f32-footprint block-byte target, vmem_limit_bytes) per TPU generation."""
    blk, lim = 8 * 1024 * 1024, 48 * 1024 * 1024        # v7x-safe (64 MiB VMEM)
    try:
        vmem = pltpu.get_tpu_info().vmem_capacity_bytes
        if vmem >= 100 * 1024 * 1024:                    # v5e / v6e: 128 MiB VMEM
            blk, lim = 12 * 1024 * 1024, 80 * 1024 * 1024
    except Exception:
        pass                                             # keep conservative default
    return blk, lim


def _choose_inner(n, sublane):
    """Lane dim of the 2D view; never requires padding."""
    if n % 128 == 0:
        # Widest lane-dense inner that still fills at least one sublane group.
        for cand in (2048, 1024, 512, 256, 128):
            if n % cand == 0 and (n // cand) >= sublane:
                return cand
        for cand in (2048, 1024, 512, 256, 128):
            if n % cand == 0:
                return cand
    # Ragged: largest divisor of n (<= 2048) used as a full-extent lane dim.
    for cand in range(min(n, 2048), 0, -1):
        if n % cand == 0:
            return cand
    return 1


def lsq_quan_forward(x, s, *, bit=4, all_positive=False, symmetric=False):
    """Pallas implementation of LsqQuan.forward (inference path).

    x : arbitrary-shaped float array (e.g. NCHW conv activation)
    s : shape-(1,) learnable step size (default torch.ones(1))
    """
    if bit >= 32:
        return x
    thd_neg, thd_pos = _thresholds(bit, all_positive, symmetric)

    orig_shape = x.shape
    n = x.size
    if n == 0:
        return x
    s = jnp.asarray(s, jnp.float32).reshape(-1)          # (1,) f32 scalar param

    itemsize = jnp.dtype(x.dtype).itemsize
    sublane = _SUBLANE_F32 * max(1, 4 // itemsize)       # 8 f32 / 16 bf16 / 32 int8

    inner = _choose_inner(n, sublane)
    rows = n // inner
    x2 = x.reshape(rows, inner)                          # metadata-only reshape

    # Block rows sized by the f32 compute footprint (in-kernel astype), never
    # the (possibly narrower) storage dtype.
    blk_target, vmem_limit = _block_config()
    br_cap = max(1, blk_target // (inner * 4))
    if br_cap >= rows:
        br = rows                                        # full extent (always legal)
    else:
        br = max(sublane, (br_cap // sublane) * sublane)
        br = min(br, rows)
    grid_n = pl.cdiv(rows, br)

    # Megacore: mid/large tensors get an even number (>=2) of grid steps so
    # both v7x TensorCores work with no one-block tail imbalance.
    if n * 4 >= _MIN_SPLIT_BYTES and rows >= 2 and grid_n % 2 == 1:
        target_steps = grid_n + 1
        br_new = pl.cdiv(rows, target_steps)
        br_new = ((br_new + sublane - 1) // sublane) * sublane
        if 0 < br_new < rows:
            br = br_new
            grid_n = pl.cdiv(rows, br)

    kernel = functools.partial(_lsq_kernel, thd_neg=thd_neg, thd_pos=thd_pos)

    out2 = pl.pallas_call(
        kernel,
        out_shape=jax.ShapeDtypeStruct((rows, inner), x.dtype),
        grid_spec=pltpu.PrefetchScalarGridSpec(
            num_scalar_prefetch=0,
            grid=(grid_n,),
            in_specs=[
                pl.BlockSpec(memory_space=pltpu.SMEM),        # s (scalar)
                pl.BlockSpec((br, inner), lambda i: (i, 0)),  # x tile
            ],
            out_specs=pl.BlockSpec((br, inner), lambda i: (i, 0)),
        ),
        compiler_params=pltpu.CompilerParams(
            dimension_semantics=("parallel",),   # megacore sharding on v7x
            vmem_limit_bytes=vmem_limit,         # explicit: v5e default is 16 MiB
        ),
    )(s, x2)

    return out2.reshape(orig_shape)


def _reference(x, s, *, bit, all_positive=False, symmetric=False):
    # Pure-JAX reference mirroring the PyTorch forward math exactly (true
    # divide, clamp, round-half-to-even, rescale).
    if bit >= 32:
        return x
    thd_neg, thd_pos = _thresholds(bit, all_positive, symmetric)
    sf = jnp.asarray(s, jnp.float32).reshape(-1)[0]
    y = x.astype(jnp.float32) / sf
    y = jnp.clip(y, thd_neg, thd_pos)
    y = jnp.round(y)
    return (y * sf).astype(x.dtype)


# TODO(synk): grad_scale / round_pass straight-through-estimator backward is
# not implemented (forward-only kernel); wrap with jax.custom_vjp for training.


if __name__ == "__main__":
    key = jax.random.PRNGKey(0)

    # 1) NCHW conv-style activation, default (signed, asymmetric) 4-bit.
    x = jax.random.normal(key, (2, 4, 16, 16), dtype=jnp.float32) * 3.0
    s = jnp.ones((1,), dtype=jnp.float32)               # nn.Parameter(torch.ones(1))
    out = jax.block_until_ready(lsq_quan_forward(x, s, bit=4))
    ref = _reference(x, s, bit=4)
    assert out.shape == x.shape and out.dtype == x.dtype
    assert jnp.allclose(out, ref, atol=1e-6), "mismatch vs reference (f32, bit=4)"

    # 2) bf16 activation, all-positive 8-bit (in-kernel dtype handling,
    #    dtype-aware 16-row sublane alignment).
    xb = (jax.random.uniform(jax.random.PRNGKey(1), (2, 4, 16, 16)) * 10.0
          ).astype(jnp.bfloat16)
    sb = jnp.full((1,), 0.25, dtype=jnp.float32)
    outb = jax.block_until_ready(
        lsq_quan_forward(xb, sb, bit=8, all_positive=True))
    refb = _reference(xb, sb, bit=8, all_positive=True)
    assert outb.dtype == xb.dtype
    assert jnp.allclose(outb.astype(jnp.float32), refb.astype(jnp.float32),
                        atol=1e-2), "mismatch vs reference (bf16, all_positive)"

    # 3) Ragged element count (no pad / slice round-trips), symmetric 3-bit.
    xr = jax.random.normal(jax.random.PRNGKey(2), (3, 5, 7, 11),
                           dtype=jnp.float32)
    sr = jnp.full((1,), 0.5, dtype=jnp.float32)
    outr = jax.block_until_ready(
        lsq_quan_forward(xr, sr, bit=3, symmetric=True))
    refr = _reference(xr, sr, bit=3, symmetric=True)
    assert outr.shape == xr.shape
    assert jnp.allclose(outr, refr, atol=1e-6), "mismatch vs reference (ragged)"

    # 4) Mid-size activation exercising the >=2 even-step megacore grid and the
    #    OOB-masked partial edge block (rows=520 -> br=264 -> grid=(2,)).
    xm = jax.random.normal(jax.random.PRNGKey(3), (5, 13, 128, 128),
                           dtype=jnp.float32)
    sm = jnp.full((1,), 0.37, dtype=jnp.float32)
    outm = jax.block_until_ready(lsq_quan_forward(xm, sm, bit=4))
    refm = _reference(xm, sm, bit=4)
    assert outm.shape == xm.shape
    assert jnp.allclose(outm, refm, atol=1e-6), "mismatch vs reference (edge block)"

    print("KERNEL_OK")
</pallas_src>

<mosaic_0001>
module attributes {stable_mosaic.version = 11 : i64} {
  func.func @_lsq_kernel(%arg0: i32, %arg1: memref<1xf32, #tpu.memory_space<smem>>, %arg2: memref<8x256xf32, #tpu.memory_space<vmem>>, %arg3: memref<8x256xf32, #tpu.memory_space<vmem>>) attributes {dimension_semantics = [#tpu.dimension_semantics<parallel>], iteration_bounds = array<i64: 1>, scalar_prefetch = 0 : i64, scratch_operands = 0 : i64, tpu.core_type = #tpu.core_type<tc>, window_params = [{transform_indices = @transform_0, window_bounds = array<i64: 1>}, {transform_indices = @transform_1, window_bounds = array<i64: 8, 256>}, {transform_indices = @transform_2, window_bounds = array<i64: 8, 256>}]} {
    %c0 = arith.constant 0 : index
    %0 = memref.load %arg1[%c0] : memref<1xf32, #tpu.memory_space<smem>>
    %c0_0 = arith.constant 0 : index
    %c0_1 = arith.constant 0 : index
    %1 = vector.load %arg2[%c0_0, %c0_1] : memref<8x256xf32, #tpu.memory_space<vmem>>, vector<8x256xf32>
    %2 = vector.broadcast %0 : f32 to vector<8x256xf32>
    %3 = arith.divf %1, %2 : vector<8x256xf32>
    %cst = arith.constant -8.000000e+00 : f32
    %cst_2 = arith.constant 7.000000e+00 : f32
    %4 = vector.broadcast %cst : f32 to vector<8x256xf32>
    %5 = arith.maximumf %4, %3 : vector<8x256xf32>
    %6 = vector.broadcast %cst_2 : f32 to vector<8x256xf32>
    %7 = arith.minimumf %6, %5 : vector<8x256xf32>
    %8 = math.roundeven %7 : vector<8x256xf32>
    %9 = vector.broadcast %0 : f32 to vector<8x256xf32>
    %10 = arith.mulf %8, %9 : vector<8x256xf32>
    %c0_3 = arith.constant 0 : index
    %c0_4 = arith.constant 0 : index
    %11 = vector.load %arg3[%c0_3, %c0_4] : memref<8x256xf32, #tpu.memory_space<vmem>>, vector<8x256xf32>
    tpu.vector_store %arg3[%c0_3, %c0_4], %10 {strides = array<i32>} : memref<8x256xf32, #tpu.memory_space<vmem>>, vector<8x256xf32>,
    return
  }
  func.func @transform_0(%arg0: i32) -> i32 {
    %c0_i32 = arith.constant 0 : i32
    %c0_i32_0 = arith.constant 0 : i32
    return %c0_i32 : i32
  }
  func.func @transform_1(%arg0: i32) -> (i32, i32) {
    %c0_i32 = arith.constant 0 : i32
    %c0_i32_0 = arith.constant 0 : i32
    return %arg0, %c0_i32 : i32, i32
  }
  func.func @transform_2(%arg0: i32) -> (i32, i32) {
    %c0_i32 = arith.constant 0 : i32
    %c0_i32_0 = arith.constant 0 : i32
    return %arg0, %c0_i32 : i32, i32
  }
}

</mosaic_0001>

<llo_original>
// kernel: tpu_custom_call.1
$region0: #{tpu_custom_call.1}
  #allocation0 [shape = 'u32[]', space=smem, size = 0x4, offset = 0x4, fixed_abs, tag = 'smem constant byte address 0x4 - core index']
  #allocation1 [shape = 'u32[144,128]{1,0:T(1,128)}', space=vmem, size = 0x12000, scoped, tag = 'internal scratch']
  #allocation2 [shape = 'f32[1]{0:T(128)S(6)}', space=smem, size = 0x200, scoped, tag = 'scoped memory for tpu_custom_call.1']
  %s0 = inlined_call_operand.<no memory space> [shape: f32[1], index: 0, kind: input, shape index: {}]
  %s1 = inlined_call_operand.hbm [shape: f32[8,256], index: 1, kind: input, shape index: {}]
  %s2 = inlined_call_operand.hbm [shape: f32[8,256], index: 2, kind: output, shape index: {}]
  %s3 = sld [smem:[#allocation0]]
  $region22: #{tpu_custom_call.1} parent=0
    _
  %s5 = ssub.s32 1, %s3
  %s6 = scalar_select 0, %s5, %s3
  %7 = sst [smem:[#allocation2]] %s0
  $region1: #{tpu_custom_call.1} parent=0
    #allocation3 [shape = 'u8[8192]{0}', space=vmem, size = 0x2000, scoped, tag = 'input window, operand 1, single buffered']
    #allocation4 [shape = 's32[1]{0}', space=sflag, size = 0x4, scoped, tag = 'scoped memory for tpu_custom_call.1']
    #allocation5 [shape = 's32[1]{0}', space=sflag, size = 0x4, scoped, tag = 'scoped memory for tpu_custom_call.1']
    #allocation6 [shape = 'u8[8192]{0}', space=vmem, size = 0x2000, scoped, tag = 'output window, operand 0, single buffered']
    %8 = vsyncpa [#allocation4], 0
    %9 = vsyncpa [#allocation5], 0
    // Predicated region
    $region2: #{tpu_custom_call.1} parent=1 // pred_check
      _
    $region3: #{tpu_custom_call.1} parent=1 // pred_check_branch
      %11 = sbr.rel (0) target = $region5
    $region4: #{tpu_custom_call.1} parent=1 // pred_region
      _
    $region5: #{tpu_custom_call.1} parent=1 // pred_fallthru
      _
    // Predicated region
    $region6: #{tpu_custom_call.1} parent=1 // pred_check
      _
    $region7: #{tpu_custom_call.1} parent=1 // pred_check_branch
      %13 = sbr.rel (0) target = $region9
    $region8: #{tpu_custom_call.1} parent=1 // pred_region
      %s15 = ssub.s32 256, 256
      %16 = vsyncadd [#allocation4], %s15
      %s18 = sshll.u32 [#allocation3], 4
      %s19 = int_to_ptr.vmem [resolvable:$true] %s18
      %21 = dma.hbm_to_vmem [thread:$0]  %s1, 256, %s19, [#allocation4]
    $region9: #{tpu_custom_call.1} parent=1 // pred_fallthru
      _
    // Predicated region
    $region10: #{tpu_custom_call.1} parent=1 // pred_check
      _
    $region11: #{tpu_custom_call.1} parent=1 // pred_check_branch
      %23 = sbr.rel (0) target = $region13
    $region12: #{tpu_custom_call.1} parent=1 // pred_region
      %24 = dma.done [#allocation4], 256
    $region13: #{tpu_custom_call.1} parent=1 // pred_fallthru
      _
    %s25 = sld [smem:[#allocation2]]
    %v26 = vld [vmem:[#allocation3] sm:$0xff]
    %v27 = vld [vmem:[#allocation3 + $0x8] sm:$0xff]
    %v28 = vstv %s25
    %v29 = vrcp.pop %v28
    %v30 = vmul.f32 %v26, %v29
    %v31 = vmul.f32 %v27, %v29
    %v32 = vmax.f32 %v30, -8.0
    %v33 = vmax.f32 %v31, -8.0
    %v34 = vmin.f32 %v32, 7.0
    %v35 = vmin.f32 %v33, 7.0
    %v36 = vround.ne.pseudo %v34
    %v37 = vround.ne.pseudo %v35
    %v38 = vmul.f32 %v36, %v28
    %v39 = vmul.f32 %v37, %v28
    %40 = vst [vmem:[#allocation6] sm:$0xff] %v38
    %41 = vst [vmem:[#allocation6 + $0x8] sm:$0xff] %v39
    // Predicated region
    $region14: #{tpu_custom_call.1} parent=1 // pred_check
      _
    $region15: #{tpu_custom_call.1} parent=1 // pred_check_branch
      %43 = sbr.rel (0) target = $region17
    $region16: #{tpu_custom_call.1} parent=1 // pred_region
      %s45 = ssub.s32 256, 256
      %46 = vsyncadd [#allocation5], %s45
      %s48 = sshll.u32 [#allocation6], 4
      %s49 = int_to_ptr.vmem [resolvable:$true] %s48
      %51 = dma.vmem_to_hbm [thread:$0]  %s49, 256, %s2, [#allocation5]
    $region17: #{tpu_custom_call.1} parent=1 // pred_fallthru
      _
    // Predicated region
    $region18: #{tpu_custom_call.1} parent=1 // pred_check
      _
    $region19: #{tpu_custom_call.1} parent=1 // pred_check_branch
      %53 = sbr.rel (0) target = $region21
    $region20: #{tpu_custom_call.1} parent=1 // pred_region
      %54 = dma.done [#allocation5], 256
    $region21: #{tpu_custom_call.1} parent=1 // pred_fallthru
      _
    %55 = vsyncpa [#allocation4], 1
    %56 = vsyncpa [#allocation5], 1

</llo_original>
